<compile_context>
chip_gen: v6e
topology: v6e:2x2x1
jax: 0.10.0
libtpu: 0.0.40
codegen_flags: <defaults>
</compile_context>

<pallas_src>
import functools

import jax
import jax.numpy as jnp
from jax.experimental import pallas as pl
from jax.experimental.pallas import tpu as pltpu


# ---------------------------------------------------------------------------
# Fused kernel: one grid step = one problem (batch element); the whole network
# (all n_layers+1 linear+coef1+relu stages and the final coef2 stage) runs in
# VMEM with no HBM round-trip of the intermediate x.
# ---------------------------------------------------------------------------
def _fused_forward_kernel(n_hidden, precision, in_ref, coef1_ref, coef2_ref, *refs):
    """refs = (w0T, w1T, ..., wLT, x_out, y_out); weights pre-transposed + padded."""
    w_refs = refs[: n_hidden + 1]
    x_out_ref = refs[n_hidden + 1]
    y_out_ref = refs[n_hidden + 2]

    coef1 = coef1_ref[...]
    mxu = coef1.dtype                       # bf16 (fast path) or f32 (exact path)

    def mm(a, b):
        return jnp.dot(a, b, preferred_element_type=jnp.float32, precision=precision)

    x_b = in_ref[...].astype(mxu)           # (N, Din) in MXU dtype
    x = None
    for i in range(n_hidden + 1):
        # TODO(synk): dropout[i-1] (for i >= 1) treated as identity (eval-mode).
        h = mm(x_b, w_refs[i][...])         # (N, d_pad), f32 accumulate
        h = mm(coef1, h.astype(mxu))        # (N, d_pad), f32 accumulate
        x = jnp.maximum(h, 0.0)             # relu in f32 (v5e has no bf16 VPU)
        x_b = x.astype(mxu)                 # single cast: reused by next layer,
                                            # the coef2 matmul, and the x store

    # Lane-dense (d_pad = 128k) unmasked store; pad columns are exactly zero.
    x_out_ref[...] = x_b if x_out_ref.dtype == mxu else x.astype(x_out_ref.dtype)

    # TODO(synk): dropout[-1] treated as identity (eval-mode semantics).
    y = mm(coef2_ref[...], x_b)
    y_out_ref[...] = jnp.maximum(y, 0.0).astype(y_out_ref.dtype)


# ---------------------------------------------------------------------------
# Parameter preparation (done ONCE, not per forward call):
#   - transpose weights to (in, out) layout,
#   - zero-pad the output feature axis to a lane-dense multiple of 128,
#   - cast MXU operands (coef matrices + weights) to the MXU dtype.
# Zero-padding is exact for Linear(bias=False) + relu.
# ---------------------------------------------------------------------------
def _round_up(x, m):
    return ((x + m - 1) // m) * m


def prepare_params(weights, coef1, coef2, mxu_dtype=jnp.bfloat16):
    d_out = weights[0].shape[0]
    d_pad = _round_up(d_out, 128)

    weights_t = []
    for i, w in enumerate(weights):
        d_in = w.shape[1]
        d_in_p = d_in if i == 0 else d_pad       # hidden layers consume padded x
        wt = jnp.zeros((d_in_p, d_pad), mxu_dtype)
        wt = wt.at[:d_in, :d_out].set(jnp.transpose(w).astype(mxu_dtype))
        weights_t.append(wt)

    return {
        "weights_t": weights_t,
        "coef1": coef1.astype(mxu_dtype),
        "coef2": coef2.astype(mxu_dtype),
        "n_output_dims": d_out,
    }


# ---------------------------------------------------------------------------
# Forward wrapper: one pallas_call, grid over the batch of problems.
# Returns PADDED outputs (.., N, d_pad) / (.., M, d_pad) in the MXU dtype; the
# pad columns are exactly zero and the consumer should ignore them (no
# wrapper-side slice = no extra HBM round-trip over x and y).
# ---------------------------------------------------------------------------
def hypergraph_conv_forward(inputs, params):
    coef1 = params["coef1"]
    coef2 = params["coef2"]
    weights_t = params["weights_t"]

    squeeze = inputs.ndim == 2
    if squeeze:
        inputs = inputs[None]
    batch, n_nodes, d_in = inputs.shape
    n_edges = coef2.shape[0]              # multiple of 8 -> clean sublane tiling
    d_pad = weights_t[0].shape[1]
    n_hidden = len(weights_t) - 1

    mxu = coef1.dtype
    # Pin full-f32 MXU passes on the exact path; default (fast) path for bf16.
    precision = jax.lax.Precision.HIGHEST if mxu == jnp.float32 else None
    out_dtype = mxu                       # bf16 outputs halve HBM writeback

    def resident(shape):
        # Constant index_map -> fetched once, stays VMEM-resident across steps.
        return pl.BlockSpec(shape, lambda b: (0,) * len(shape))

    in_specs = [
        pl.BlockSpec((None, n_nodes, d_in), lambda b: (b, 0, 0)),   # per-problem input
        resident(coef1.shape),
        resident(coef2.shape),
    ] + [resident(w.shape) for w in weights_t]

    out_specs = (
        pl.BlockSpec((None, n_nodes, d_pad), lambda b: (b, 0, 0)),
        pl.BlockSpec((None, n_edges, d_pad), lambda b: (b, 0, 0)),
    )

    x_pad, y_pad = pl.pallas_call(
        functools.partial(_fused_forward_kernel, n_hidden, precision),
        grid=(batch,),
        out_shape=(
            jax.ShapeDtypeStruct((batch, n_nodes, d_pad), out_dtype),
            jax.ShapeDtypeStruct((batch, n_edges, d_pad), out_dtype),
        ),
        in_specs=in_specs,
        out_specs=out_specs,
        compiler_params=pltpu.CompilerParams(
            dimension_semantics=("parallel",),        # megacore shards the batch on v7x
            vmem_limit_bytes=32 * 1024 * 1024,
        ),
    )(inputs, coef1, coef2, *weights_t)

    if squeeze:
        x_pad, y_pad = x_pad[0], y_pad[0]
    return x_pad, y_pad


# ---------------------------------------------------------------------------
# Parameter / input construction and references.
# ---------------------------------------------------------------------------
def _make_params(key, n_nodes, n_edges, n_input_dims, n_output_dims, n_layers):
    keys = jax.random.split(key, n_layers + 4)
    weights = []
    fan_in = n_input_dims
    for i in range(n_layers + 1):
        bound = 1.0 / jnp.sqrt(fan_in)
        w = jax.random.uniform(
            keys[i], (n_output_dims, fan_in), jnp.float32, -bound, bound
        )
        weights.append(w)
        fan_in = n_output_dims

    # Sparse-ish coefficient matrices (deterministic, ~25% density), dense layout.
    k_c1, k_c2, k_m1 = keys[n_layers + 1:]
    c1_vals = jax.random.uniform(k_c1, (n_nodes, n_nodes), jnp.float32)
    c1_mask = jax.random.uniform(k_m1, (n_nodes, n_nodes)) < 0.25
    coef1 = jnp.where(c1_mask, c1_vals, 0.0) + 0.5 * jnp.eye(n_nodes, dtype=jnp.float32)
    c2_vals = jax.random.uniform(k_c2, (n_edges, n_nodes), jnp.float32)
    c2_mask = c2_vals > 0.75
    coef2 = jnp.where(c2_mask, c2_vals, 0.0)
    return weights, coef1, coef2


def _reference_forward_f32(inputs, weights, coef1, coef2):
    """Exact PyTorch-module ordering, f32, precision pinned to HIGHEST."""
    hi = jax.lax.Precision.HIGHEST

    def mm(a, b):
        return jnp.dot(a, b, precision=hi)

    x = inputs
    for w in weights:
        x = jnp.maximum(mm(coef1, mm(x, w.T)), 0.0)
    y = jnp.maximum(mm(coef2, x), 0.0)
    return x, y


def _reference_forward_mixed(inputs, weights, coef1, coef2, mxu_dtype):
    """Mirror of the kernel math: mxu_dtype operands, f32 accumulate, PyTorch order."""

    def mm(a, b):
        return jnp.dot(a.astype(mxu_dtype), b.astype(mxu_dtype),
                       preferred_element_type=jnp.float32)

    x = inputs
    for w in weights:
        x = jnp.maximum(mm(coef1, mm(x, w.T)), 0.0)
    y = jnp.maximum(mm(coef2, x), 0.0)
    return x, y


if __name__ == "__main__":
    n_nodes = 64          # N
    n_edges = 48          # M (rows of coef2), multiple of 8
    n_input_dims = 16
    n_output_dims = 32
    n_layers = 2
    batch = 4             # leading "parallel" grid axis (megacore on v7x)

    key = jax.random.PRNGKey(0)
    k_in, k_par = jax.random.split(key)
    inputs = jax.random.normal(k_in, (batch, n_nodes, n_input_dims), jnp.float32)
    weights, coef1, coef2 = _make_params(
        k_par, n_nodes, n_edges, n_input_dims, n_output_dims, n_layers
    )

    # ---- Fast path: bf16 MXU operands, f32 accumulate, bf16 padded outputs --
    params_bf16 = prepare_params(weights, coef1, coef2, mxu_dtype=jnp.bfloat16)
    x_pad, y_pad = hypergraph_conv_forward(inputs, params_bf16)
    jax.block_until_ready((x_pad, y_pad))
    d_pad = params_bf16["weights_t"][0].shape[1]
    assert x_pad.shape == (batch, n_nodes, d_pad)
    assert y_pad.shape == (batch, n_edges, d_pad)
    # Pad columns are exactly zero (bias-free Linear + relu with zero-padded W).
    assert jnp.all(x_pad[..., n_output_dims:] == 0)
    assert jnp.all(y_pad[..., n_output_dims:] == 0)
    # Validation-only slice/cast (the hot path keeps the padded slab).
    x = x_pad[..., :n_output_dims].astype(jnp.float32)
    y = y_pad[..., :n_output_dims].astype(jnp.float32)
    x_ref_m, y_ref_m = jax.vmap(
        lambda xi: _reference_forward_mixed(xi, weights, coef1, coef2, jnp.bfloat16)
    )(inputs)
    assert jnp.allclose(x, x_ref_m, atol=2e-2, rtol=2e-2)
    assert jnp.allclose(y, y_ref_m, atol=2e-2, rtol=2e-2)

    # ---- Exact-f32 path: PyTorch order, HIGHEST precision in kernel + ref ---
    # (also exercises the un-batched 2-D input path)
    params_f32 = prepare_params(weights, coef1, coef2, mxu_dtype=jnp.float32)
    x32_pad, y32_pad = hypergraph_conv_forward(inputs[0], params_f32)
    jax.block_until_ready((x32_pad, y32_pad))
    x_ref, y_ref = _reference_forward_f32(inputs[0], weights, coef1, coef2)
    assert jnp.allclose(x32_pad[:, :n_output_dims], x_ref, atol=1e-3, rtol=1e-3)
    assert jnp.allclose(y32_pad[:, :n_output_dims], y_ref, atol=1e-3, rtol=1e-3)

    print("KERNEL_OK")
</pallas_src>

<mosaic_0001>
module attributes {stable_mosaic.version = 11 : i64} {
  func.func @_fused_forward_kernel(%arg0: i32, %arg1: memref<1x64x16xf32, #tpu.memory_space<vmem>>, %arg2: memref<64x64xbf16, #tpu.memory_space<vmem>>, %arg3: memref<48x64xbf16, #tpu.memory_space<vmem>>, %arg4: memref<16x128xbf16, #tpu.memory_space<vmem>>, %arg5: memref<128x128xbf16, #tpu.memory_space<vmem>>, %arg6: memref<128x128xbf16, #tpu.memory_space<vmem>>, %arg7: memref<1x64x128xbf16, #tpu.memory_space<vmem>>, %arg8: memref<1x48x128xbf16, #tpu.memory_space<vmem>>) attributes {dimension_semantics = [#tpu.dimension_semantics<parallel>], iteration_bounds = array<i64: 4>, scalar_prefetch = 0 : i64, scratch_operands = 0 : i64, tpu.core_type = #tpu.core_type<tc>, window_params = [{transform_indices = @transform_0, window_bounds = array<i64: 1, 64, 16>}, {pipeline_mode = #tpu.pipeline_mode<synchronous>, transform_indices = @transform_1, window_bounds = array<i64: 64, 64>}, {pipeline_mode = #tpu.pipeline_mode<synchronous>, transform_indices = @transform_2, window_bounds = array<i64: 48, 64>}, {pipeline_mode = #tpu.pipeline_mode<synchronous>, transform_indices = @transform_3, window_bounds = array<i64: 16, 128>}, {pipeline_mode = #tpu.pipeline_mode<synchronous>, transform_indices = @transform_4, window_bounds = array<i64: 128, 128>}, {pipeline_mode = #tpu.pipeline_mode<synchronous>, transform_indices = @transform_5, window_bounds = array<i64: 128, 128>}, {transform_indices = @transform_6, window_bounds = array<i64: 1, 64, 128>}, {transform_indices = @transform_7, window_bounds = array<i64: 1, 48, 128>}]} {
    %c0 = arith.constant 0 : index
    %c0_0 = arith.constant 0 : index
    %0 = vector.load %arg2[%c0, %c0_0] : memref<64x64xbf16, #tpu.memory_space<vmem>>, vector<64x64xbf16>
    %c0_1 = arith.constant 0 : index
    %c0_2 = arith.constant 0 : index
    %c0_3 = arith.constant 0 : index
    %1 = vector.load %arg1[%c0_1, %c0_2, %c0_3] : memref<1x64x16xf32, #tpu.memory_space<vmem>>, vector<1x64x16xf32>
    %2 = vector.shape_cast %1 : vector<1x64x16xf32> to vector<64x16xf32>
    %3 = arith.truncf %2 : vector<64x16xf32> to vector<64x16xbf16>
    %c0_4 = arith.constant 0 : index
    %c0_5 = arith.constant 0 : index
    %4 = vector.load %arg4[%c0_4, %c0_5] : memref<16x128xbf16, #tpu.memory_space<vmem>>, vector<16x128xbf16>
    %cst = arith.constant dense<0.000000e+00> : vector<64x128xf32>
    %5 = tpu.matmul %3, %4, %cst {dimension_numbers = #tpu.dot_dimension_numbers<[1], [0], [0], [1], [0, 0, 1, 1], [], []>} : vector<64x16xbf16>, vector<16x128xbf16>, vector<64x128xf32> -> vector<64x128xf32>
    %6 = arith.truncf %5 : vector<64x128xf32> to vector<64x128xbf16>
    %cst_6 = arith.constant dense<0.000000e+00> : vector<64x128xf32>
    %7 = tpu.matmul %0, %6, %cst_6 {dimension_numbers = #tpu.dot_dimension_numbers<[1], [0], [0], [1], [0, 0, 1, 1], [], []>} : vector<64x64xbf16>, vector<64x128xbf16>, vector<64x128xf32> -> vector<64x128xf32>
    %cst_7 = arith.constant 0.000000e+00 : f32
    %8 = vector.broadcast %cst_7 : f32 to vector<64x128xf32>
    %9 = arith.maximumf %7, %8 : vector<64x128xf32>
    %10 = arith.truncf %9 : vector<64x128xf32> to vector<64x128xbf16>
    %c0_8 = arith.constant 0 : index
    %c0_9 = arith.constant 0 : index
    %11 = vector.load %arg5[%c0_8, %c0_9] : memref<128x128xbf16, #tpu.memory_space<vmem>>, vector<128x128xbf16>
    %cst_10 = arith.constant dense<0.000000e+00> : vector<64x128xf32>
    %12 = tpu.matmul %10, %11, %cst_10 {dimension_numbers = #tpu.dot_dimension_numbers<[1], [0], [0], [1], [0, 0, 1, 1], [], []>} : vector<64x128xbf16>, vector<128x128xbf16>, vector<64x128xf32> -> vector<64x128xf32>
    %13 = arith.truncf %12 : vector<64x128xf32> to vector<64x128xbf16>
    %cst_11 = arith.constant dense<0.000000e+00> : vector<64x128xf32>
    %14 = tpu.matmul %0, %13, %cst_11 {dimension_numbers = #tpu.dot_dimension_numbers<[1], [0], [0], [1], [0, 0, 1, 1], [], []>} : vector<64x64xbf16>, vector<64x128xbf16>, vector<64x128xf32> -> vector<64x128xf32>
    %cst_12 = arith.constant 0.000000e+00 : f32
    %15 = vector.broadcast %cst_12 : f32 to vector<64x128xf32>
    %16 = arith.maximumf %14, %15 : vector<64x128xf32>
    %17 = arith.truncf %16 : vector<64x128xf32> to vector<64x128xbf16>
    %c0_13 = arith.constant 0 : index
    %c0_14 = arith.constant 0 : index
    %18 = vector.load %arg6[%c0_13, %c0_14] : memref<128x128xbf16, #tpu.memory_space<vmem>>, vector<128x128xbf16>
    %cst_15 = arith.constant dense<0.000000e+00> : vector<64x128xf32>
    %19 = tpu.matmul %17, %18, %cst_15 {dimension_numbers = #tpu.dot_dimension_numbers<[1], [0], [0], [1], [0, 0, 1, 1], [], []>} : vector<64x128xbf16>, vector<128x128xbf16>, vector<64x128xf32> -> vector<64x128xf32>
    %20 = arith.truncf %19 : vector<64x128xf32> to vector<64x128xbf16>
    %cst_16 = arith.constant dense<0.000000e+00> : vector<64x128xf32>
    %21 = tpu.matmul %0, %20, %cst_16 {dimension_numbers = #tpu.dot_dimension_numbers<[1], [0], [0], [1], [0, 0, 1, 1], [], []>} : vector<64x64xbf16>, vector<64x128xbf16>, vector<64x128xf32> -> vector<64x128xf32>
    %cst_17 = arith.constant 0.000000e+00 : f32
    %22 = vector.broadcast %cst_17 : f32 to vector<64x128xf32>
    %23 = arith.maximumf %21, %22 : vector<64x128xf32>
    %24 = arith.truncf %23 : vector<64x128xf32> to vector<64x128xbf16>
    %c0_18 = arith.constant 0 : index
    %c0_19 = arith.constant 0 : index
    %c0_20 = arith.constant 0 : index
    %25 = vector.load %arg7[%c0_18, %c0_19, %c0_20] : memref<1x64x128xbf16, #tpu.memory_space<vmem>>, vector<1x64x128xbf16>
    %26 = vector.shape_cast %25 : vector<1x64x128xbf16> to vector<64x128xbf16>
    %27 = vector.shape_cast %24 : vector<64x128xbf16> to vector<1x64x128xbf16>
    tpu.vector_store %arg7[%c0_18, %c0_19, %c0_20], %27 {strides = array<i32>} : memref<1x64x128xbf16, #tpu.memory_space<vmem>>, vector<1x64x128xbf16>,
    %c0_21 = arith.constant 0 : index
    %c0_22 = arith.constant 0 : index
    %28 = vector.load %arg3[%c0_21, %c0_22] : memref<48x64xbf16, #tpu.memory_space<vmem>>, vector<48x64xbf16>
    %cst_23 = arith.constant dense<0.000000e+00> : vector<48x128xf32>
    %29 = tpu.matmul %28, %24, %cst_23 {dimension_numbers = #tpu.dot_dimension_numbers<[1], [0], [0], [1], [0, 0, 1, 1], [], []>} : vector<48x64xbf16>, vector<64x128xbf16>, vector<48x128xf32> -> vector<48x128xf32>
    %cst_24 = arith.constant 0.000000e+00 : f32
    %30 = vector.broadcast %cst_24 : f32 to vector<48x128xf32>
    %31 = arith.maximumf %29, %30 : vector<48x128xf32>
    %32 = arith.truncf %31 : vector<48x128xf32> to vector<48x128xbf16>
    %c0_25 = arith.constant 0 : index
    %c0_26 = arith.constant 0 : index
    %c0_27 = arith.constant 0 : index
    %33 = vector.load %arg8[%c0_25, %c0_26, %c0_27] : memref<1x48x128xbf16, #tpu.memory_space<vmem>>, vector<1x48x128xbf16>
    %34 = vector.shape_cast %33 : vector<1x48x128xbf16> to vector<48x128xbf16>
    %35 = vector.shape_cast %32 : vector<48x128xbf16> to vector<1x48x128xbf16>
    tpu.vector_store %arg8[%c0_25, %c0_26, %c0_27], %35 {strides = array<i32>} : memref<1x48x128xbf16, #tpu.memory_space<vmem>>, vector<1x48x128xbf16>,
    return
  }
  func.func @transform_0(%arg0: i32) -> (i32, i32, i32) {
    %c0_i32 = arith.constant 0 : i32
    %c0_i32_0 = arith.constant 0 : i32
    %c0_i32_1 = arith.constant 0 : i32
    return %arg0, %c0_i32, %c0_i32_0 : i32, i32, i32
  }
  func.func @transform_1(%arg0: i32) -> (i32, i32) {
    %c0_i32 = arith.constant 0 : i32
    %c0_i32_0 = arith.constant 0 : i32
    %c0_i32_1 = arith.constant 0 : i32
    return %c0_i32, %c0_i32_0 : i32, i32
  }
  func.func @transform_2(%arg0: i32) -> (i32, i32) {
    %c0_i32 = arith.constant 0 : i32
    %c0_i32_0 = arith.constant 0 : i32
    %c0_i32_1 = arith.constant 0 : i32
    return %c0_i32, %c0_i32_0 : i32, i32
  }
  func.func @transform_3(%arg0: i32) -> (i32, i32) {
    %c0_i32 = arith.constant 0 : i32
    %c0_i32_0 = arith.constant 0 : i32
    %c0_i32_1 = arith.constant 0 : i32
    return %c0_i32, %c0_i32_0 : i32, i32
  }
  func.func @transform_4(%arg0: i32) -> (i32, i32) {
    %c0_i32 = arith.constant 0 : i32
    %c0_i32_0 = arith.constant 0 : i32
    %c0_i32_1 = arith.constant 0 : i32
    return %c0_i32, %c0_i32_0 : i32, i32
  }
  func.func @transform_5(%arg0: i32) -> (i32, i32) {
    %c0_i32 = arith.constant 0 : i32
    %c0_i32_0 = arith.constant 0 : i32
    %c0_i32_1 = arith.constant 0 : i32
    return %c0_i32, %c0_i32_0 : i32, i32
  }
  func.func @transform_6(%arg0: i32) -> (i32, i32, i32) {
    %c0_i32 = arith.constant 0 : i32
    %c0_i32_0 = arith.constant 0 : i32
    %c0_i32_1 = arith.constant 0 : i32
    return %arg0, %c0_i32, %c0_i32_0 : i32, i32, i32
  }
  func.func @transform_7(%arg0: i32) -> (i32, i32, i32) {
    %c0_i32 = arith.constant 0 : i32
    %c0_i32_0 = arith.constant 0 : i32
    %c0_i32_1 = arith.constant 0 : i32
    return %arg0, %c0_i32, %c0_i32_0 : i32, i32, i32
  }
}

</mosaic_0001>

<llo_original>
// kernel: tpu_custom_call.1
$region0: #{tpu_custom_call.1}
  #allocation0 [shape = 'u32[]', space=smem, size = 0x4, offset = 0x4, fixed_abs, tag = 'smem constant byte address 0x4 - core index']
  #allocation1 [shape = 'u32[144,128]{1,0:T(1,128)}', space=vmem, size = 0x12000, scoped, tag = 'internal scratch']
  %s0 = inlined_call_operand.vmem [shape: f32[4,64,16], index: 0, kind: input, shape index: {}]
  %s1 = inlined_call_operand.vmem [shape: bf16[64,64], index: 1, kind: input, shape index: {}]
  %s2 = inlined_call_operand.vmem [shape: bf16[48,64], index: 2, kind: input, shape index: {}]
  %s3 = inlined_call_operand.vmem [shape: bf16[16,128], index: 3, kind: input, shape index: {}]
  %s4 = inlined_call_operand.vmem [shape: bf16[128,128], index: 4, kind: input, shape index: {}]
  %s5 = inlined_call_operand.vmem [shape: bf16[128,128], index: 5, kind: input, shape index: {}]
  %s6 = inlined_call_operand.hbm [shape: bf16[4,64,128], index: 6, kind: output, shape index: {0}]
  %s7 = inlined_call_operand.hbm [shape: bf16[4,48,128], index: 7, kind: output, shape index: {1}]
  %8 = xla_tuple %s6, %s7
  %s9 = sld [smem:[#allocation0]]
  $region65: #{tpu_custom_call.1} parent=0
    _
  %s11 = ssub.s32 1, %s9
  %s12 = scalar_select 0, %s11, %s9
  $region1: #{tpu_custom_call.1} parent=0
    #allocation2 [shape = 'u8[32768]{0}', space=vmem, size = 0x8000, scoped, tag = 'output window, operand 0']
    #allocation3 [shape = 's32[2]{0}', space=sflag, size = 0x8, scoped, tag = 'scoped memory for tpu_custom_call.1']
    #allocation4 [shape = 'u8[24576]{0}', space=vmem, size = 0x6000, scoped, tag = 'output window, operand 1']
    #allocation5 [shape = 's32[2]{0}', space=sflag, size = 0x8, scoped, tag = 'scoped memory for tpu_custom_call.1']
    %13 = vsyncpa [#allocation3], 0
    %s14 = scalar_lea.sflag [#allocation3], 1
    %15 = vsyncpa %s14, 0
    %16 = vsyncpa [#allocation5], 0
    %s17 = scalar_lea.sflag [#allocation5], 1
    %18 = vsyncpa %s17, 0
    loop: start=0, step=1, limit=6
    $region2: #{tpu_custom_call.1} parent=1 // loop_pre_header
      _
    $region3: #{tpu_custom_call.1} parent=1 // loop_header
      %s20 = sphi 0, %s24
      %p21 = scmp.ge.s32.totalorder %s20, 6
      %s30 = sphi 0, %s32
      %s33 = sphi 0, %s30
      %s34 = sphi 0, %s33
      %s50 = sphi 0, %s34
      %s54 = sphi 0, %s54
      %s56 = sphi 0, %s54
      %s57 = sphi 0, %s56
      %s71 = sphi 0, %s57
      %s75 = sphi 0, %s75
      %s77 = sphi 0, %s75
      %s78 = sphi 0, %s77
      %s92 = sphi 0, %s78
      %s96 = sphi 0, %s96
      %s98 = sphi 0, %s96
      %s99 = sphi 0, %s98
      %s113 = sphi 0, %s99
      %s117 = sphi 0, %s117
      %s119 = sphi 0, %s117
      %s120 = sphi 0, %s119
      %s134 = sphi 0, %s120
      %s138 = sphi 0, %s138
      %s140 = sphi 0, %s138
      %s141 = sphi 0, %s140
      %s155 = sphi 0, %s141
      %s161 = sphi 0, %s163
      %s164 = sphi 0, %s161
      %s165 = sphi 0, %s164
      %s181 = sphi 0, %s165
      %s187 = sphi 0, %s189
      %s190 = sphi 0, %s187
      %s191 = sphi 0, %s190
      %s207 = sphi 0, %s191
    $region4: #{tpu_custom_call.1} parent=1 // loop_header_branch
      %23 = sbr.rel (%p21) target = $region8
    $region5: #{tpu_custom_call.1} parent=1 // loop_body
      %s25 = ssub.s32 %s20, 1
      %s26 = ssub.s32 %s20, 2
      %s27 = sadd.s32 %s20, 1
      %s28 = ssub.s32 %s20, %s27
      %p29 = scmp.eq.s32.totalorder %s28, 0
      %s31 = sadd.s32 %s30, 1
      %s32 = scalar_select %p29, %s30, %s31
      %p35 = pneg %p29
      %p36 = scmp.eq.s32.totalorder %s20, 3
      %p37 = por %p35, %p36
      %p38 = scmp.ne.s32.totalorder %s30, %s33
      %p39 = scmp.eq.s32.totalorder %s20, 0
      %p40 = por %p38, %p39
      %p41 = scmp.ne.s32.totalorder %s30, %s33
      %p42 = scmp.eq.s32.totalorder %s25, 3
      %p43 = por %p41, %p42
      %p44 = scmp.ne.s32.totalorder %s33, %s34
      %p45 = scmp.eq.s32.totalorder %s25, 0
      %p46 = por %p44, %p45
      %p47 = scmp.ne.s32.totalorder %s33, %s34
      %p48 = scmp.eq.s32.totalorder %s26, 3
      %p49 = por %p47, %p48
      %p51 = scmp.ne.s32.totalorder %s34, %s50
      %p52 = scmp.eq.s32.totalorder %s26, 0
      %p53 = por %p51, %p52
      %s55 = sadd.s32 %s54, 1
      %p58 = scmp.eq.s32.totalorder %s20, 3
      %p59 = scmp.ne.s32.totalorder %s54, %s56
      %p60 = scmp.eq.s32.totalorder %s20, 0
      %p61 = por %p59, %p60
      %p62 = scmp.ne.s32.totalorder %s54, %s56
      %p63 = scmp.eq.s32.totalorder %s25, 3
      %p64 = por %p62, %p63
      %p65 = scmp.ne.s32.totalorder %s56, %s57
      %p66 = scmp.eq.s32.totalorder %s25, 0
      %p67 = por %p65, %p66
      %p68 = scmp.ne.s32.totalorder %s56, %s57
      %p69 = scmp.eq.s32.totalorder %s26, 3
      %p70 = por %p68, %p69
      %p72 = scmp.ne.s32.totalorder %s57, %s71
      %p73 = scmp.eq.s32.totalorder %s26, 0
      %p74 = por %p72, %p73
      %s76 = sadd.s32 %s75, 1
      %p79 = scmp.eq.s32.totalorder %s20, 3
      %p80 = scmp.ne.s32.totalorder %s75, %s77
      %p81 = scmp.eq.s32.totalorder %s20, 0
      %p82 = por %p80, %p81
      %p83 = scmp.ne.s32.totalorder %s75, %s77
      %p84 = scmp.eq.s32.totalorder %s25, 3
      %p85 = por %p83, %p84
      %p86 = scmp.ne.s32.totalorder %s77, %s78
      %p87 = scmp.eq.s32.totalorder %s25, 0
      %p88 = por %p86, %p87
      %p89 = scmp.ne.s32.totalorder %s77, %s78
      %p90 = scmp.eq.s32.totalorder %s26, 3
      %p91 = por %p89, %p90
      %p93 = scmp.ne.s32.totalorder %s78, %s92
      %p94 = scmp.eq.s32.totalorder %s26, 0
      %p95 = por %p93, %p94
      %s97 = sadd.s32 %s96, 1
      %p100 = scmp.eq.s32.totalorder %s20, 3
      %p101 = scmp.ne.s32.totalorder %s96, %s98
      %p102 = scmp.eq.s32.totalorder %s20, 0
      %p103 = por %p101, %p102
      %p104 = scmp.ne.s32.totalorder %s96, %s98
      %p105 = scmp.eq.s32.totalorder %s25, 3
      %p106 = por %p104, %p105
      %p107 = scmp.ne.s32.totalorder %s98, %s99
      %p108 = scmp.eq.s32.totalorder %s25, 0
      %p109 = por %p107, %p108
      %p110 = scmp.ne.s32.totalorder %s98, %s99
      %p111 = scmp.eq.s32.totalorder %s26, 3
      %p112 = por %p110, %p111
      %p114 = scmp.ne.s32.totalorder %s99, %s113
      %p115 = scmp.eq.s32.totalorder %s26, 0
      %p116 = por %p114, %p115
      %s118 = sadd.s32 %s117, 1
      %p121 = scmp.eq.s32.totalorder %s20, 3
      %p122 = scmp.ne.s32.totalorder %s117, %s119
      %p123 = scmp.eq.s32.totalorder %s20, 0
      %p124 = por %p122, %p123
      %p125 = scmp.ne.s32.totalorder %s117, %s119
      %p126 = scmp.eq.s32.totalorder %s25, 3
      %p127 = por %p125, %p126
      %p128 = scmp.ne.s32.totalorder %s119, %s120
      %p129 = scmp.eq.s32.totalorder %s25, 0
      %p130 = por %p128, %p129
      %p131 = scmp.ne.s32.totalorder %s119, %s120
      %p132 = scmp.eq.s32.totalorder %s26, 3
      %p133 = por %p131, %p132
      %p135 = scmp.ne.s32.totalorder %s120, %s134
      %p136 = scmp.eq.s32.totalorder %s26, 0
      %p137 = por %p135, %p136
      %s139 = sadd.s32 %s138, 1
      %p142 = scmp.eq.s32.totalorder %s20, 3
      %p143 = scmp.ne.s32.totalorder %s138, %s140
      %p144 = scmp.eq.s32.totalorder %s20, 0
      %p145 = por %p143, %p144
      %p146 = scmp.ne.s32.totalorder %s138, %s140
      %p147 = scmp.eq.s32.totalorder %s25, 3
      %p148 = por %p146, %p147
      %p149 = scmp.ne.s32.totalorder %s140, %s141
      %p150 = scmp.eq.s32.totalorder %s25, 0
      %p151 = por %p149, %p150
      %p152 = scmp.ne.s32.totalorder %s140, %s141
      %p153 = scmp.eq.s32.totalorder %s26, 3
      %p154 = por %p152, %p153
      %p156 = scmp.ne.s32.totalorder %s141, %s155
      %p157 = scmp.eq.s32.totalorder %s26, 0
      %p158 = por %p156, %p157
      %s159 = ssub.s32 %s20, %s27
      %p160 = scmp.eq.s32.totalorder %s159, 0
      %s162 = sadd.s32 %s161, 1
      %s163 = scalar_select %p160, %s161, %s162
      %p166 = pneg %p160
      %p167 = scmp.eq.s32.totalorder %s20, 3
      %p168 = por %p166, %p167
      %p169 = scmp.ne.s32.totalorder %s161, %s164
      %p170 = scmp.eq.s32.totalorder %s20, 0
      %p171 = por %p169, %p170
      %p172 = scmp.ne.s32.totalorder %s161, %s164
      %p173 = scmp.eq.s32.totalorder %s25, 3
      %p174 = por %p172, %p173
      %p175 = scmp.ne.s32.totalorder %s164, %s165
      %p176 = scmp.eq.s32.totalorder %s25, 0
      %p177 = por %p175, %p176
      %p178 = scmp.ne.s32.totalorder %s164, %s165
      %p179 = scmp.eq.s32.totalorder %s26, 3
      %p180 = por %p178, %p179
      %p182 = scmp.ne.s32.totalorder %s165, %s181
      %p183 = scmp.eq.s32.totalorder %s26, 0
      %p184 = por %p182, %p183
      %s185 = ssub.s32 %s20, %s27
      %p186 = scmp.eq.s32.totalorder %s185, 0
      %s188 = sadd.s32 %s187, 1
      %s189 = scalar_select %p186, %s187, %s188
      %p192 = pneg %p186
      %p193 = scmp.eq.s32.totalorder %s20, 3
      %p194 = por %p192, %p193
      %p195 = scmp.ne.s32.totalorder %s187, %s190
      %p196 = scmp.eq.s32.totalorder %s20, 0
      %p197 = por %p195, %p196
      %p198 = scmp.ne.s32.totalorder %s187, %s190
      %p199 = scmp.eq.s32.totalorder %s25, 3
      %p200 = por %p198, %p199
      %p201 = scmp.ne.s32.totalorder %s190, %s191
      %p202 = scmp.eq.s32.totalorder %s25, 0
      %p203 = por %p201, %p202
      %p204 = scmp.ne.s32.totalorder %s190, %s191
      %p205 = scmp.eq.s32.totalorder %s26, 3
      %p206 = por %p204, %p205
      %p208 = scmp.ne.s32.totalorder %s191, %s207
      %p209 = scmp.eq.s32.totalorder %s26, 0
      %p210 = por %p208, %p209
      %p211 = scmp.le.s32.totalorder 1, %s20
      %p212 = scmp.lt.s32.totalorder %s20, 5
      %p213 = pnand %p211, %p212
      %p214 = pneg %p213
      // Predicated region
      $region9: #{tpu_custom_call.1} parent=5 // pred_check
        _
      $region10: #{tpu_custom_call.1} parent=5 // pred_check_branch
        %216 = sbr.rel (%p213) target = $region12
      $region11: #{tpu_custom_call.1} parent=5 // pred_region
        %s217 = ssub.s32 %s20, 1
        // Predicated region
        $region13: #{tpu_custom_call.1} parent=11 // pred_check
          %p218 = pneg %p67
        $region14: #{tpu_custom_call.1} parent=11 // pred_check_branch
          %220 = sbr.rel (%p218) target = $region16
        $region15: #{tpu_custom_call.1} parent=11 // pred_region
          _
        $region16: #{tpu_custom_call.1} parent=11 // pred_fallthru
          _
        // Predicated region
        $region17: #{tpu_custom_call.1} parent=11 // pred_check
          %p221 = pneg %p88
        $region18: #{tpu_custom_call.1} parent=11 // pred_check_branch
          %223 = sbr.rel (%p221) target = $region20
        $region19: #{tpu_custom_call.1} parent=11 // pred_region
          _
        $region20: #{tpu_custom_call.1} parent=11 // pred_fallthru
          _
        // Predicated region
        $region21: #{tpu_custom_call.1} parent=11 // pred_check
          %p224 = pneg %p109
        $region22: #{tpu_custom_call.1} parent=11 // pred_check_branch
          %226 = sbr.rel (%p224) target = $region24
        $region23: #{tpu_custom_call.1} parent=11 // pred_region
          _
        $region24: #{tpu_custom_call.1} parent=11 // pred_fallthru
          _
        // Predicated region
        $region25: #{tpu_custom_call.1} parent=11 // pred_check
          %p227 = pneg %p130
        $region26: #{tpu_custom_call.1} parent=11 // pred_check_branch
          %229 = sbr.rel (%p227) target = $region28
        $region27: #{tpu_custom_call.1} parent=11 // pred_region
          _
        $region28: #{tpu_custom_call.1} parent=11 // pred_fallthru
          _
        // Predicated region
        $region29: #{tpu_custom_call.1} parent=11 // pred_check
          %p230 = pneg %p151
        $region30: #{tpu_custom_call.1} parent=11 // pred_check_branch
          %232 = sbr.rel (%p230) target = $region32
        $region31: #{tpu_custom_call.1} parent=11 // pred_region
          _
        $region32: #{tpu_custom_call.1} parent=11 // pred_fallthru
          _
      $region12: #{tpu_custom_call.1} parent=5 // pred_fallthru
        _
      %p233 = scmp.lt.s32.totalorder %s20, 4
      // Predicated region
      $region33: #{tpu_custom_call.1} parent=5 // pred_check
        %p234 = pneg %p233
      $region34: #{tpu_custom_call.1} parent=5 // pred_check_branch
        %236 = sbr.rel (%p234) target = $region36
      $region35: #{tpu_custom_call.1} parent=5 // pred_region
        // Predicated region
        $region37: #{tpu_custom_call.1} parent=35 // pred_check
          %p237 = pneg %p40
        $region38: #{tpu_custom_call.1} parent=35 // pred_check_branch
          %239 = sbr.rel (%p237) target = $region40
        $region39: #{tpu_custom_call.1} parent=35 // pred_region
          %p240 = scmp.lt.s32.totalorder %s20, 3
          %s241 = scalar_select %p240, %s20, 3
          %s242 = smul.addr %s241, 8
          %s243 = smul.addr %s242, 8
          %s244 = scalar_lea.vmem %s0, %s243
        $region40: #{tpu_custom_call.1} parent=35 // pred_fallthru
          _
      $region36: #{tpu_custom_call.1} parent=5 // pred_fallthru
        _
      %p245 = scmp.le.s32.totalorder 1, %s20
      %p246 = scmp.lt.s32.totalorder %s20, 5
      %p247 = pnand %p245, %p246
      %p248 = pneg %p247
      // Predicated region
      $region41: #{tpu_custom_call.1} parent=5 // pred_check
        _
      $region42: #{tpu_custom_call.1} parent=5 // pred_check_branch
        %250 = sbr.rel (%p247) target = $region44
      $region43: #{tpu_custom_call.1} parent=5 // pred_region
        %s251 = ssub.s32 %s20, 1
        %p252 = scmp.lt.s32.totalorder %s25, 3
        %s253 = scalar_select %p252, %s25, 3
        %s254 = smul.addr %s253, 8
        %s255 = smul.addr %s254, 8
        %s256 = scalar_lea.vmem %s0, %s255
        %p257 = pneg %p46
        %p258 = pneg %p43
        %p259 = pneg %p67
        %p260 = pneg %p64
        %p261 = pneg %p88
        %p262 = pneg %p85
        %p263 = pneg %p109
        %p264 = pneg %p106
        %p265 = pneg %p130
        %p266 = pneg %p127
        %p267 = pneg %p151
        %p268 = pneg %p148
        %p269 = pneg %p177
        %p270 = pneg %p174
        %s271 = sand.u32 %s164, 1
        %s272 = scalar_lea.sflag [#allocation3], %s271
        %s273 = sand.u32 %s164, 1
        %s274 = smul.addr %s273, 32
        %s275 = scalar_lea.vmem [#allocation2], %s274
        %p276 = pneg %p203
        %p277 = pneg %p200
        %s278 = sand.u32 %s190, 1
        %s279 = scalar_lea.sflag [#allocation5], %s278
        %s280 = sand.u32 %s190, 1
        %s281 = smul.addr %s280, 24
        %s282 = scalar_lea.vmem [#allocation4], %s281
        %p283 = scmp.lt.s32.totalorder %s25, 3
        %s284 = scalar_select %p283, %s25, 3
        %s285 = smul.addr %s284, 8
        %s286 = smul.addr %s285, 8
        %s287 = scalar_lea.vmem %s0, %s286
        %v289 = vld [vmem:[%s1] sm:$0xf]
        %v290 = vld [vmem:[%s1 + $0x4] sm:$0xf]
        %v291 = vld [vmem:[%s1 + $0x8] sm:$0xf]
        %v292 = vld [vmem:[%s1 + $0xc] sm:$0xf]
        %v293 = vld [vmem:[%s1 + $0x10] sm:$0xf]
        %v294 = vld [vmem:[%s1 + $0x14] sm:$0xf]
        %v295 = vld [vmem:[%s1 + $0x18] sm:$0xf]
        %v296 = vld [vmem:[%s1 + $0x1c] sm:$0xf]
        %v297 = vld [vmem:[%s287] sm:$0xff]
        %v298 = vld [vmem:[%s287 + $0x8] sm:$0xff]
        %v299 = vld [vmem:[%s287 + $0x10] sm:$0xff]
        %v300 = vld [vmem:[%s287 + $0x18] sm:$0xff]
        %v301 = vld [vmem:[%s287 + $0x20] sm:$0xff]
        %v302 = vld [vmem:[%s287 + $0x28] sm:$0xff]
        %v303 = vld [vmem:[%s287 + $0x30] sm:$0xff]
        %v304 = vld [vmem:[%s287 + $0x38] sm:$0xff]
        %v305 = vpack.c.bf16 %v298, %v297
        %v306 = vpack.c.bf16 %v300, %v299
        %v307 = vpack.c.bf16 %v302, %v301
        %v308 = vpack.c.bf16 %v304, %v303
        %v309 = vld [vmem:[%s3] sm:$0xf]
        %v310 = vld [vmem:[%s3 + $0x4] sm:$0xf]
        %v313 = vunpack.c.l.b16 %v309
        %v314 = vunpack.c.l.b16 %v310
        %v315 = vpack.c.b16 %v314, %v313
        %vm317 = vcmask 130048
        %v319 = vsel %vm317, %v305, 0
        %v322 = vsel %vm317, %v306, 0
        %v325 = vsel %vm317, %v307, 0
        %v328 = vsel %vm317, %v308, 0
        %330 = vmatprep.subr.bf16.mxu0 0
        %331 = vmatpush1.bf16.msra.mxu0 0
        %332 = vmatprep.subr.bf16.mxu0 0
        %333 = vmatpush1.bf16.msra.mxu0 0
        %334 = vmatprep.subr.bf16.mxu0 0
        %335 = vmatpush1.bf16.msra.mxu0 0
        %336 = vmatprep.subr.bf16.mxu0 0
        %337 = vmatpush1.bf16.msra.mxu0 0
        %338 = vmatprep.subr.bf16.mxu0 0
        %339 = vmatpush1.bf16.msra.mxu0 0
        %340 = vmatprep.subr.bf16.mxu0 0
        %341 = vmatpush1.bf16.msra.mxu0 0
        %342 = vmatprep.subr.bf16.mxu0 0
        %343 = vmatpush1.bf16.msra.mxu0 0
        %344 = vmatprep.subr.bf16.mxu0 0
        %345 = vmatpush1.bf16.msra.mxu0 %v315
        %346 = vmatprep.subr.bf16.mxu0 0
        %347 = vmatpush2.bf16.msra.mxu0 0
        %348 = vmatprep.subr.bf16.mxu0 0
        %349 = vmatpush2.bf16.msra.mxu0 0
        %350 = vmatprep.subr.bf16.mxu0 0
        %351 = vmatpush2.bf16.msra.mxu0 0
        %352 = vmatprep.subr.bf16.mxu0 0
        %353 = vmatpush2.bf16.msra.mxu0 0
        %354 = vmatprep.subr.bf16.mxu0 0
        %355 = vmatpush2.bf16.msra.mxu0 0
        %356 = vmatprep.subr.bf16.mxu0 0
        %357 = vmatpush2.bf16.msra.mxu0 0
        %358 = vmatprep.subr.bf16.mxu0 0
        %359 = vmatpush2.bf16.msra.mxu0 0
        %360 = vmatprep.subr.bf16.mxu0 0
        %361 = vmatpush2.bf16.msra.mxu0 0
        %362 = vmatprep.mubr.bf16.mxu0 0
        %363 = vmatmul.mubr.bf16.gmra.mxu0 %v319
        %v364 = vpop.f32.mrf.mxu0
        %v365 = vadd.f32 0.0, %v364
        %v366 = vpop.f32.mrf.mxu0
        %v367 = vpop.f32.mrf.mxu0
        %v368 = vadd.f32 0.0, %v367
        %v369 = vpop.f32.mrf.mxu0
        %370 = vmatprep.mubr.bf16.mxu0 0
        %371 = vmatmul.mubr.bf16.gmra.mxu0 %v322
        %v372 = vpop.f32.mrf.mxu0
        %v373 = vadd.f32 0.0, %v372
        %v374 = vpop.f32.mrf.mxu0
        %v375 = vpop.f32.mrf.mxu0
        %v376 = vadd.f32 0.0, %v375
        %v377 = vpop.f32.mrf.mxu0
        %378 = vmatprep.mubr.bf16.mxu0 0
        %379 = vmatmul.mubr.bf16.gmra.mxu0 %v325
        %v380 = vpop.f32.mrf.mxu0
        %v381 = vadd.f32 0.0, %v380
        %v382 = vpop.f32.mrf.mxu0
        %v383 = vpop.f32.mrf.mxu0
        %v384 = vadd.f32 0.0, %v383
        %v385 = vpop.f32.mrf.mxu0
        %386 = vmatprep.mubr.bf16.mxu0 0
        %387 = vmatmul.mubr.bf16.gmra.mxu0 %v328
        %v388 = vpop.f32.mrf.mxu0
        %v389 = vadd.f32 0.0, %v388
        %v390 = vpop.f32.mrf.mxu0
        %v391 = vpop.f32.mrf.mxu0
        %v392 = vadd.f32 0.0, %v391
        %v393 = vpop.f32.mrf.mxu0
        %394 = vdwg.mxu0
        %v395 = vpack.c.bf16 %v368, %v365
        %v396 = vpack.c.bf16 %v376, %v373
        %v397 = vpack.c.bf16 %v384, %v381
        %v398 = vpack.c.bf16 %v392, %v389
        %v407 = vunpack.c.l.b16 %v289
        %v408 = vunpack.c.l.b16 %v290
        %v409 = vunpack.c.l.b16 %v291
        %v410 = vunpack.c.l.b16 %v292
        %v411 = vunpack.c.l.b16 %v293
        %v412 = vunpack.c.l.b16 %v294
        %v413 = vunpack.c.l.b16 %v295
        %v414 = vunpack.c.l.b16 %v296
        %v415 = vpack.c.b16 %v408, %v407
        %v416 = vpack.c.b16 %v410, %v409
        %v417 = vpack.c.b16 %v412, %v411
        %v418 = vpack.c.b16 %v414, %v413
        %vm419 = vcmask 523264
        %v421 = vsel %vm419, %v415, 0
        %v424 = vsel %vm419, %v416, 0
        %v427 = vsel %vm419, %v417, 0
        %v430 = vsel %vm419, %v418, 0
        %432 = vmatprep.subr.bf16.mxu0 0
        %433 = vmatpush1.bf16.msra.mxu0 0
        %434 = vmatprep.subr.bf16.mxu0 0
        %435 = vmatpush1.bf16.msra.mxu0 0
        %436 = vmatprep.subr.bf16.mxu0 0
        %437 = vmatpush1.bf16.msra.mxu0 0
        %438 = vmatprep.subr.bf16.mxu0 0
        %439 = vmatpush1.bf16.msra.mxu0 0
        %440 = vmatprep.subr.bf16.mxu0 0
        %441 = vmatpush1.bf16.msra.mxu0 %v398
        %442 = vmatprep.subr.bf16.mxu0 0
        %443 = vmatpush1.bf16.msra.mxu0 %v397
        %444 = vmatprep.subr.bf16.mxu0 0
        %445 = vmatpush1.bf16.msra.mxu0 %v396
        %446 = vmatprep.subr.bf16.mxu0 0
        %447 = vmatpush1.bf16.msra.mxu0 %v395
        %448 = vmatprep.subr.bf16.mxu0 0
        %449 = vmatpush2.bf16.msra.mxu0 0
        %450 = vmatprep.subr.bf16.mxu0 0
        %451 = vmatpush2.bf16.msra.mxu0 0
        %452 = vmatprep.subr.bf16.mxu0 0
        %453 = vmatpush2.bf16.msra.mxu0 0
        %454 = vmatprep.subr.bf16.mxu0 0
        %455 = vmatpush2.bf16.msra.mxu0 0
        %456 = vmatprep.subr.bf16.mxu0 0
        %457 = vmatpush2.bf16.msra.mxu0 0
        %458 = vmatprep.subr.bf16.mxu0 0
        %459 = vmatpush2.bf16.msra.mxu0 0
        %460 = vmatprep.subr.bf16.mxu0 0
        %461 = vmatpush2.bf16.msra.mxu0 0
        %462 = vmatprep.subr.bf16.mxu0 0
        %463 = vmatpush2.bf16.msra.mxu0 0
        %464 = vmatprep.mubr.bf16.mxu0 0
        %465 = vmatmul.mubr.bf16.gmra.mxu0 %v421
        %v466 = vpop.f32.mrf.mxu0
        %v467 = vadd.f32 0.0, %v466
        %v468 = vpop.f32.mrf.mxu0
        %v469 = vpop.f32.mrf.mxu0
        %v470 = vadd.f32 0.0, %v469
        %v471 = vpop.f32.mrf.mxu0
        %472 = vmatprep.mubr.bf16.mxu0 0
        %473 = vmatmul.mubr.bf16.gmra.mxu0 %v424
        %v474 = vpop.f32.mrf.mxu0
        %v475 = vadd.f32 0.0, %v474
        %v476 = vpop.f32.mrf.mxu0
        %v477 = vpop.f32.mrf.mxu0
        %v478 = vadd.f32 0.0, %v477
        %v479 = vpop.f32.mrf.mxu0
        %480 = vmatprep.mubr.bf16.mxu0 0
        %481 = vmatmul.mubr.bf16.gmra.mxu0 %v427
        %v482 = vpop.f32.mrf.mxu0
        %v483 = vadd.f32 0.0, %v482
        %v484 = vpop.f32.mrf.mxu0
        %v485 = vpop.f32.mrf.mxu0
        %v486 = vadd.f32 0.0, %v485
        %v487 = vpop.f32.mrf.mxu0
        %488 = vmatprep.mubr.bf16.mxu0 0
        %489 = vmatmul.mubr.bf16.gmra.mxu0 %v430
        %v490 = vpop.f32.mrf.mxu0
        %v491 = vadd.f32 0.0, %v490
        %v492 = vpop.f32.mrf.mxu0
        %v493 = vpop.f32.mrf.mxu0
        %v494 = vadd.f32 0.0, %v493
        %v495 = vpop.f32.mrf.mxu0
        %496 = vdwg.mxu0
        %v497 = vmax.f32 %v467, 0.0
        %v498 = vmax.f32 %v470, 0.0
        %v499 = vmax.f32 %v475, 0.0
        %v500 = vmax.f32 %v478, 0.0
        %v501 = vmax.f32 %v483, 0.0
        %v502 = vmax.f32 %v486, 0.0
        %v503 = vmax.f32 %v491, 0.0
        %v504 = vmax.f32 %v494, 0.0
        %v505 = vpack.c.bf16 %v498, %v497
        %v506 = vpack.c.bf16 %v500, %v499
        %v507 = vpack.c.bf16 %v502, %v501
        %v508 = vpack.c.bf16 %v504, %v503
        %v509 = vld [vmem:[%s4] sm:$0xf]
        %v510 = vld [vmem:[%s4 + $0x4] sm:$0xf]
        %v511 = vld [vmem:[%s4 + $0x8] sm:$0xf]
        %v512 = vld [vmem:[%s4 + $0xc] sm:$0xf]
        %v513 = vld [vmem:[%s4 + $0x10] sm:$0xf]
        %v514 = vld [vmem:[%s4 + $0x14] sm:$0xf]
        %v515 = vld [vmem:[%s4 + $0x18] sm:$0xf]
        %v516 = vld [vmem:[%s4 + $0x1c] sm:$0xf]
        %v517 = vld [vmem:[%s4 + $0x20] sm:$0xf]
        %v518 = vld [vmem:[%s4 + $0x24] sm:$0xf]
        %v519 = vld [vmem:[%s4 + $0x28] sm:$0xf]
        %v520 = vld [vmem:[%s4 + $0x2c] sm:$0xf]
        %v521 = vld [vmem:[%s4 + $0x30] sm:$0xf]
        %v522 = vld [vmem:[%s4 + $0x34] sm:$0xf]
        %v523 = vld [vmem:[%s4 + $0x38] sm:$0xf]
        %v524 = vld [vmem:[%s4 + $0x3c] sm:$0xf]
        %v541 = vunpack.c.l.b16 %v509
        %v542 = vunpack.c.l.b16 %v510
        %v543 = vunpack.c.l.b16 %v511
        %v544 = vunpack.c.l.b16 %v512
        %v545 = vunpack.c.l.b16 %v513
        %v546 = vunpack.c.l.b16 %v514
        %v547 = vunpack.c.l.b16 %v515
        %v548 = vunpack.c.l.b16 %v516
        %v549 = vunpack.c.l.b16 %v517
        %v550 = vunpack.c.l.b16 %v518
        %v551 = vunpack.c.l.b16 %v519
        %v552 = vunpack.c.l.b16 %v520
        %v553 = vunpack.c.l.b16 %v521
        %v554 = vunpack.c.l.b16 %v522
        %v555 = vunpack.c.l.b16 %v523
        %v556 = vunpack.c.l.b16 %v524
        %v557 = vpack.c.b16 %v542, %v541
        %v558 = vpack.c.b16 %v544, %v543
        %v559 = vpack.c.b16 %v546, %v545
        %v560 = vpack.c.b16 %v548, %v547
        %v561 = vpack.c.b16 %v550, %v549
        %v562 = vpack.c.b16 %v552, %v551
        %v563 = vpack.c.b16 %v554, %v553
        %v564 = vpack.c.b16 %v556, %v555
        %573 = vmatprep.subr.bf16.mxu0 0
        %574 = vmatpush1.bf16.msra.mxu0 %v564
        %575 = vmatprep.subr.bf16.mxu0 0
        %576 = vmatpush1.bf16.msra.mxu0 %v563
        %577 = vmatprep.subr.bf16.mxu0 0
        %578 = vmatpush1.bf16.msra.mxu0 %v562
        %579 = vmatprep.subr.bf16.mxu0 0
        %580 = vmatpush1.bf16.msra.mxu0 %v561
        %581 = vmatprep.subr.bf16.mxu0 0
        %582 = vmatpush1.bf16.msra.mxu0 %v560
        %583 = vmatprep.subr.bf16.mxu0 0
        %584 = vmatpush1.bf16.msra.mxu0 %v559
        %585 = vmatprep.subr.bf16.mxu0 0
        %586 = vmatpush1.bf16.msra.mxu0 %v558
        %587 = vmatprep.subr.bf16.mxu0 0
        %588 = vmatpush1.bf16.msra.mxu0 %v557
        %589 = vmatprep.subr.bf16.mxu0 0
        %590 = vmatpush2.bf16.msra.mxu0 0
        %591 = vmatprep.subr.bf16.mxu0 0
        %592 = vmatpush2.bf16.msra.mxu0 0
        %593 = vmatprep.subr.bf16.mxu0 0
        %594 = vmatpush2.bf16.msra.mxu0 0
        %595 = vmatprep.subr.bf16.mxu0 0
        %596 = vmatpush2.bf16.msra.mxu0 0
        %597 = vmatprep.subr.bf16.mxu0 0
        %598 = vmatpush2.bf16.msra.mxu0 0
        %599 = vmatprep.subr.bf16.mxu0 0
        %600 = vmatpush2.bf16.msra.mxu0 0
        %601 = vmatprep.subr.bf16.mxu0 0
        %602 = vmatpush2.bf16.msra.mxu0 0
        %603 = vmatprep.subr.bf16.mxu0 0
        %604 = vmatpush2.bf16.msra.mxu0 0
        %605 = vmatprep.mubr.bf16.mxu0 0
        %606 = vmatmul.mubr.bf16.gmra.mxu0 %v505
        %v607 = vpop.f32.mrf.mxu0
        %v608 = vadd.f32 0.0, %v607
        %v609 = vpop.f32.mrf.mxu0
        %v610 = vpop.f32.mrf.mxu0
        %v611 = vadd.f32 0.0, %v610
        %v612 = vpop.f32.mrf.mxu0
        %613 = vmatprep.mubr.bf16.mxu0 0
        %614 = vmatmul.mubr.bf16.gmra.mxu0 %v506
        %v615 = vpop.f32.mrf.mxu0
        %v616 = vadd.f32 0.0, %v615
        %v617 = vpop.f32.mrf.mxu0
        %v618 = vpop.f32.mrf.mxu0
        %v619 = vadd.f32 0.0, %v618
        %v620 = vpop.f32.mrf.mxu0
        %621 = vmatprep.mubr.bf16.mxu0 0
        %622 = vmatmul.mubr.bf16.gmra.mxu0 %v507
        %v623 = vpop.f32.mrf.mxu0
        %v624 = vadd.f32 0.0, %v623
        %v625 = vpop.f32.mrf.mxu0
        %v626 = vpop.f32.mrf.mxu0
        %v627 = vadd.f32 0.0, %v626
        %v628 = vpop.f32.mrf.mxu0
        %629 = vmatprep.mubr.bf16.mxu0 0
        %630 = vmatmul.mubr.bf16.gmra.mxu0 %v508
        %v631 = vpop.f32.mrf.mxu0
        %v632 = vadd.f32 0.0, %v631
        %v633 = vpop.f32.mrf.mxu0
        %v634 = vpop.f32.mrf.mxu0
        %v635 = vadd.f32 0.0, %v634
        %v636 = vpop.f32.mrf.mxu0
        %637 = vdwg.mxu0
        %v638 = vpack.c.bf16 %v611, %v608
        %v639 = vpack.c.bf16 %v619, %v616
        %v640 = vpack.c.bf16 %v627, %v624
        %v641 = vpack.c.bf16 %v635, %v632
        %642 = vmatprep.subr.bf16.mxu0 0
        %643 = vmatpush1.bf16.msra.mxu0 0
        %644 = vmatprep.subr.bf16.mxu0 0
        %645 = vmatpush1.bf16.msra.mxu0 0
        %646 = vmatprep.subr.bf16.mxu0 0
        %647 = vmatpush1.bf16.msra.mxu0 0
        %648 = vmatprep.subr.bf16.mxu0 0
        %649 = vmatpush1.bf16.msra.mxu0 0
        %650 = vmatprep.subr.bf16.mxu0 0
        %651 = vmatpush1.bf16.msra.mxu0 %v641
        %652 = vmatprep.subr.bf16.mxu0 0
        %653 = vmatpush1.bf16.msra.mxu0 %v640
        %654 = vmatprep.subr.bf16.mxu0 0
        %655 = vmatpush1.bf16.msra.mxu0 %v639
        %656 = vmatprep.subr.bf16.mxu0 0
        %657 = vmatpush1.bf16.msra.mxu0 %v638
        %658 = vmatprep.subr.bf16.mxu0 0
        %659 = vmatpush2.bf16.msra.mxu0 0
        %660 = vmatprep.subr.bf16.mxu0 0
        %661 = vmatpush2.bf16.msra.mxu0 0
        %662 = vmatprep.subr.bf16.mxu0 0
        %663 = vmatpush2.bf16.msra.mxu0 0
        %664 = vmatprep.subr.bf16.mxu0 0
        %665 = vmatpush2.bf16.msra.mxu0 0
        %666 = vmatprep.subr.bf16.mxu0 0
        %667 = vmatpush2.bf16.msra.mxu0 0
        %668 = vmatprep.subr.bf16.mxu0 0
        %669 = vmatpush2.bf16.msra.mxu0 0
        %670 = vmatprep.subr.bf16.mxu0 0
        %671 = vmatpush2.bf16.msra.mxu0 0
        %672 = vmatprep.subr.bf16.mxu0 0
        %673 = vmatpush2.bf16.msra.mxu0 0
        %674 = vmatprep.mubr.bf16.mxu0 0
        %675 = vmatmul.mubr.bf16.gmra.mxu0 %v421
        %v676 = vpop.f32.mrf.mxu0
        %v677 = vadd.f32 0.0, %v676
        %v678 = vpop.f32.mrf.mxu0
        %v679 = vpop.f32.mrf.mxu0
        %v680 = vadd.f32 0.0, %v679
        %v681 = vpop.f32.mrf.mxu0
        %682 = vmatprep.mubr.bf16.mxu0 0
        %683 = vmatmul.mubr.bf16.gmra.mxu0 %v424
        %v684 = vpop.f32.mrf.mxu0
        %v685 = vadd.f32 0.0, %v684
        %v686 = vpop.f32.mrf.mxu0
        %v687 = vpop.f32.mrf.mxu0
        %v688 = vadd.f32 0.0, %v687
        %v689 = vpop.f32.mrf.mxu0
        %690 = vmatprep.mubr.bf16.mxu0 0
        %691 = vmatmul.mubr.bf16.gmra.mxu0 %v427
        %v692 = vpop.f32.mrf.mxu0
        %v693 = vadd.f32 0.0, %v692
        %v694 = vpop.f32.mrf.mxu0
        %v695 = vpop.f32.mrf.mxu0
        %v696 = vadd.f32 0.0, %v695
        %v697 = vpop.f32.mrf.mxu0
        %698 = vmatprep.mubr.bf16.mxu0 0
        %699 = vmatmul.mubr.bf16.gmra.mxu0 %v430
        %v700 = vpop.f32.mrf.mxu0
        %v701 = vadd.f32 0.0, %v700
        %v702 = vpop.f32.mrf.mxu0
        %v703 = vpop.f32.mrf.mxu0
        %v704 = vadd.f32 0.0, %v703
        %v705 = vpop.f32.mrf.mxu0
        %706 = vdwg.mxu0
        %v707 = vmax.f32 %v677, 0.0
        %v708 = vmax.f32 %v680, 0.0
        %v709 = vmax.f32 %v685, 0.0
        %v710 = vmax.f32 %v688, 0.0
        %v711 = vmax.f32 %v693, 0.0
        %v712 = vmax.f32 %v696, 0.0
        %v713 = vmax.f32 %v701, 0.0
        %v714 = vmax.f32 %v704, 0.0
        %v715 = vpack.c.bf16 %v708, %v707
        %v716 = vpack.c.bf16 %v710, %v709
        %v717 = vpack.c.bf16 %v712, %v711
        %v718 = vpack.c.bf16 %v714, %v713
        %v719 = vld [vmem:[%s5] sm:$0xf]
        %v720 = vld [vmem:[%s5 + $0x4] sm:$0xf]
        %v721 = vld [vmem:[%s5 + $0x8] sm:$0xf]
        %v722 = vld [vmem:[%s5 + $0xc] sm:$0xf]
        %v723 = vld [vmem:[%s5 + $0x10] sm:$0xf]
        %v724 = vld [vmem:[%s5 + $0x14] sm:$0xf]
        %v725 = vld [vmem:[%s5 + $0x18] sm:$0xf]
        %v726 = vld [vmem:[%s5 + $0x1c] sm:$0xf]
        %v727 = vld [vmem:[%s5 + $0x20] sm:$0xf]
        %v728 = vld [vmem:[%s5 + $0x24] sm:$0xf]
        %v729 = vld [vmem:[%s5 + $0x28] sm:$0xf]
        %v730 = vld [vmem:[%s5 + $0x2c] sm:$0xf]
        %v731 = vld [vmem:[%s5 + $0x30] sm:$0xf]
        %v732 = vld [vmem:[%s5 + $0x34] sm:$0xf]
        %v733 = vld [vmem:[%s5 + $0x38] sm:$0xf]
        %v734 = vld [vmem:[%s5 + $0x3c] sm:$0xf]
        %v751 = vunpack.c.l.b16 %v719
        %v752 = vunpack.c.l.b16 %v720
        %v753 = vunpack.c.l.b16 %v721
        %v754 = vunpack.c.l.b16 %v722
        %v755 = vunpack.c.l.b16 %v723
        %v756 = vunpack.c.l.b16 %v724
        %v757 = vunpack.c.l.b16 %v725
        %v758 = vunpack.c.l.b16 %v726
        %v759 = vunpack.c.l.b16 %v727
        %v760 = vunpack.c.l.b16 %v728
        %v761 = vunpack.c.l.b16 %v729
        %v762 = vunpack.c.l.b16 %v730
        %v763 = vunpack.c.l.b16 %v731
        %v764 = vunpack.c.l.b16 %v732
        %v765 = vunpack.c.l.b16 %v733
        %v766 = vunpack.c.l.b16 %v734
        %v767 = vpack.c.b16 %v752, %v751
        %v768 = vpack.c.b16 %v754, %v753
        %v769 = vpack.c.b16 %v756, %v755
        %v770 = vpack.c.b16 %v758, %v757
        %v771 = vpack.c.b16 %v760, %v759
        %v772 = vpack.c.b16 %v762, %v761
        %v773 = vpack.c.b16 %v764, %v763
        %v774 = vpack.c.b16 %v766, %v765
        %783 = vmatprep.subr.bf16.mxu0 0
        %784 = vmatpush1.bf16.msra.mxu0 %v774
        %785 = vmatprep.subr.bf16.mxu0 0
        %786 = vmatpush1.bf16.msra.mxu0 %v773
        %787 = vmatprep.subr.bf16.mxu0 0
        %788 = vmatpush1.bf16.msra.mxu0 %v772
        %789 = vmatprep.subr.bf16.mxu0 0
        %790 = vmatpush1.bf16.msra.mxu0 %v771
        %791 = vmatprep.subr.bf16.mxu0 0
        %792 = vmatpush1.bf16.msra.mxu0 %v770
        %793 = vmatprep.subr.bf16.mxu0 0
        %794 = vmatpush1.bf16.msra.mxu0 %v769
        %795 = vmatprep.subr.bf16.mxu0 0
        %796 = vmatpush1.bf16.msra.mxu0 %v768
        %797 = vmatprep.subr.bf16.mxu0 0
        %798 = vmatpush1.bf16.msra.mxu0 %v767
        %799 = vmatprep.subr.bf16.mxu0 0
        %800 = vmatpush2.bf16.msra.mxu0 0
        %801 = vmatprep.subr.bf16.mxu0 0
        %802 = vmatpush2.bf16.msra.mxu0 0
        %803 = vmatprep.subr.bf16.mxu0 0
        %804 = vmatpush2.bf16.msra.mxu0 0
        %805 = vmatprep.subr.bf16.mxu0 0
        %806 = vmatpush2.bf16.msra.mxu0 0
        %807 = vmatprep.subr.bf16.mxu0 0
        %808 = vmatpush2.bf16.msra.mxu0 0
        %809 = vmatprep.subr.bf16.mxu0 0
        %810 = vmatpush2.bf16.msra.mxu0 0
        %811 = vmatprep.subr.bf16.mxu0 0
        %812 = vmatpush2.bf16.msra.mxu0 0
        %813 = vmatprep.subr.bf16.mxu0 0
        %814 = vmatpush2.bf16.msra.mxu0 0
        %815 = vmatprep.mubr.bf16.mxu0 0
        %816 = vmatmul.mubr.bf16.gmra.mxu0 %v715
        %v817 = vpop.f32.mrf.mxu0
        %v818 = vadd.f32 0.0, %v817
        %v819 = vpop.f32.mrf.mxu0
        %v820 = vpop.f32.mrf.mxu0
        %v821 = vadd.f32 0.0, %v820
        %v822 = vpop.f32.mrf.mxu0
        %823 = vmatprep.mubr.bf16.mxu0 0
        %824 = vmatmul.mubr.bf16.gmra.mxu0 %v716
        %v825 = vpop.f32.mrf.mxu0
        %v826 = vadd.f32 0.0, %v825
        %v827 = vpop.f32.mrf.mxu0
        %v828 = vpop.f32.mrf.mxu0
        %v829 = vadd.f32 0.0, %v828
        %v830 = vpop.f32.mrf.mxu0
        %831 = vmatprep.mubr.bf16.mxu0 0
        %832 = vmatmul.mubr.bf16.gmra.mxu0 %v717
        %v833 = vpop.f32.mrf.mxu0
        %v834 = vadd.f32 0.0, %v833
        %v835 = vpop.f32.mrf.mxu0
        %v836 = vpop.f32.mrf.mxu0
        %v837 = vadd.f32 0.0, %v836
        %v838 = vpop.f32.mrf.mxu0
        %839 = vmatprep.mubr.bf16.mxu0 0
        %840 = vmatmul.mubr.bf16.gmra.mxu0 %v718
        %v841 = vpop.f32.mrf.mxu0
        %v842 = vadd.f32 0.0, %v841
        %v843 = vpop.f32.mrf.mxu0
        %v844 = vpop.f32.mrf.mxu0
        %v845 = vadd.f32 0.0, %v844
        %v846 = vpop.f32.mrf.mxu0
        %847 = vdwg.mxu0
        %v848 = vpack.c.bf16 %v821, %v818
        %v849 = vpack.c.bf16 %v829, %v826
        %v850 = vpack.c.bf16 %v837, %v834
        %v851 = vpack.c.bf16 %v845, %v842
        %852 = vmatprep.subr.bf16.mxu0 0
        %853 = vmatpush1.bf16.msra.mxu0 0
        %854 = vmatprep.subr.bf16.mxu0 0
        %855 = vmatpush1.bf16.msra.mxu0 0
        %856 = vmatprep.subr.bf16.mxu0 0
        %857 = vmatpush1.bf16.msra.mxu0 0
        %858 = vmatprep.subr.bf16.mxu0 0
        %859 = vmatpush1.bf16.msra.mxu0 0
        %860 = vmatprep.subr.bf16.mxu0 0
        %861 = vmatpush1.bf16.msra.mxu0 %v851
        %862 = vmatprep.subr.bf16.mxu0 0
        %863 = vmatpush1.bf16.msra.mxu0 %v850
        %864 = vmatprep.subr.bf16.mxu0 0
        %865 = vmatpush1.bf16.msra.mxu0 %v849
        %866 = vmatprep.subr.bf16.mxu0 0
        %867 = vmatpush1.bf16.msra.mxu0 %v848
        %868 = vmatprep.subr.bf16.mxu0 0
        %869 = vmatpush2.bf16.msra.mxu0 0
        %870 = vmatprep.subr.bf16.mxu0 0
        %871 = vmatpush2.bf16.msra.mxu0 0
        %872 = vmatprep.subr.bf16.mxu0 0
        %873 = vmatpush2.bf16.msra.mxu0 0
        %874 = vmatprep.subr.bf16.mxu0 0
        %875 = vmatpush2.bf16.msra.mxu0 0
        %876 = vmatprep.subr.bf16.mxu0 0
        %877 = vmatpush2.bf16.msra.mxu0 0
        %878 = vmatprep.subr.bf16.mxu0 0
        %879 = vmatpush2.bf16.msra.mxu0 0
        %880 = vmatprep.subr.bf16.mxu0 0
        %881 = vmatpush2.bf16.msra.mxu0 0
        %882 = vmatprep.subr.bf16.mxu0 0
        %883 = vmatpush2.bf16.msra.mxu0 0
        %884 = vmatprep.mubr.bf16.mxu0 0
        %885 = vmatmul.mubr.bf16.gmra.mxu0 %v421
        %v886 = vpop.f32.mrf.mxu0
        %v887 = vadd.f32 0.0, %v886
        %v888 = vpop.f32.mrf.mxu0
        %v889 = vpop.f32.mrf.mxu0
        %v890 = vadd.f32 0.0, %v889
        %v891 = vpop.f32.mrf.mxu0
        %892 = vmatprep.mubr.bf16.mxu0 0
        %893 = vmatmul.mubr.bf16.gmra.mxu0 %v424
        %v894 = vpop.f32.mrf.mxu0
        %v895 = vadd.f32 0.0, %v894
        %v896 = vpop.f32.mrf.mxu0
        %v897 = vpop.f32.mrf.mxu0
        %v898 = vadd.f32 0.0, %v897
        %v899 = vpop.f32.mrf.mxu0
        %900 = vmatprep.mubr.bf16.mxu0 0
        %901 = vmatmul.mubr.bf16.gmra.mxu0 %v427
        %v902 = vpop.f32.mrf.mxu0
        %v903 = vadd.f32 0.0, %v902
        %v904 = vpop.f32.mrf.mxu0
        %v905 = vpop.f32.mrf.mxu0
        %v906 = vadd.f32 0.0, %v905
        %v907 = vpop.f32.mrf.mxu0
        %908 = vmatprep.mubr.bf16.mxu0 0
        %909 = vmatmul.mubr.bf16.gmra.mxu0 %v430
        %v910 = vpop.f32.mrf.mxu0
        %v911 = vadd.f32 0.0, %v910
        %v912 = vpop.f32.mrf.mxu0
        %v913 = vpop.f32.mrf.mxu0
        %v914 = vadd.f32 0.0, %v913
        %v915 = vpop.f32.mrf.mxu0
        %916 = vdwg.mxu0
        %v917 = vmax.f32 %v887, 0.0
        %v918 = vmax.f32 %v890, 0.0
        %v919 = vmax.f32 %v895, 0.0
        %v920 = vmax.f32 %v898, 0.0
        %v921 = vmax.f32 %v903, 0.0
        %v922 = vmax.f32 %v906, 0.0
        %v923 = vmax.f32 %v911, 0.0
        %v924 = vmax.f32 %v914, 0.0
        %v925 = vpack.c.bf16 %v918, %v917
        %v926 = vpack.c.bf16 %v920, %v919
        %v927 = vpack.c.bf16 %v922, %v921
        %v928 = vpack.c.bf16 %v924, %v923
        %v933 = vunpack.c.l.b16 %v925
        %v934 = vunpack.c.h.b16 %v925
        %v935 = vunpack.c.l.b16 %v926
        %v936 = vunpack.c.h.b16 %v926
        %v937 = vunpack.c.l.b16 %v927
        %v938 = vunpack.c.h.b16 %v927
        %v939 = vunpack.c.l.b16 %v928
        %v940 = vunpack.c.h.b16 %v928
        %v941 = vpack.c.b16 %v933, %v933
        %v942 = vpack.c.b16 %v934, %v934
        %v943 = vpack.c.b16 %v935, %v935
        %v944 = vpack.c.b16 %v936, %v936
        %v945 = vpack.c.b16 %v937, %v937
        %v946 = vpack.c.b16 %v938, %v938
        %v947 = vpack.c.b16 %v939, %v939
        %v948 = vpack.c.b16 %v940, %v940
        %957 = vst [vmem:[%s275] sm:$0xf] %v941
        %958 = vst [vmem:[%s275 + $0x4] sm:$0xf] %v942
        %959 = vst [vmem:[%s275 + $0x8] sm:$0xf] %v943
        %960 = vst [vmem:[%s275 + $0xc] sm:$0xf] %v944
        %961 = vst [vmem:[%s275 + $0x10] sm:$0xf] %v945
        %962 = vst [vmem:[%s275 + $0x14] sm:$0xf] %v946
        %963 = vst [vmem:[%s275 + $0x18] sm:$0xf] %v947
        %964 = vst [vmem:[%s275 + $0x1c] sm:$0xf] %v948
        %v965 = vld [vmem:[%s2] sm:$0xf]
        %v966 = vld [vmem:[%s2 + $0x4] sm:$0xf]
        %v967 = vld [vmem:[%s2 + $0x8] sm:$0xf]
        %v968 = vld [vmem:[%s2 + $0xc] sm:$0xf]
        %v969 = vld [vmem:[%s2 + $0x10] sm:$0xf]
        %v970 = vld [vmem:[%s2 + $0x14] sm:$0xf]
        %v977 = vunpack.c.l.b16 %v965
        %v978 = vunpack.c.l.b16 %v966
        %v979 = vunpack.c.l.b16 %v967
        %v980 = vunpack.c.l.b16 %v968
        %v981 = vunpack.c.l.b16 %v969
        %v982 = vunpack.c.l.b16 %v970
        %v983 = vpack.c.b16 %v978, %v977
        %v984 = vpack.c.b16 %v980, %v979
        %v985 = vpack.c.b16 %v982, %v981
        %v987 = vsel %vm419, %v983, 0
        %v990 = vsel %vm419, %v984, 0
        %v993 = vsel %vm419, %v985, 0
        %995 = vmatprep.subr.bf16.mxu0 0
        %996 = vmatpush1.bf16.msra.mxu0 0
        %997 = vmatprep.subr.bf16.mxu0 0
        %998 = vmatpush1.bf16.msra.mxu0 0
        %999 = vmatprep.subr.bf16.mxu0 0
        %1000 = vmatpush1.bf16.msra.mxu0 0
        %1001 = vmatprep.subr.bf16.mxu0 0
        %1002 = vmatpush1.bf16.msra.mxu0 0
        %1003 = vmatprep.subr.bf16.mxu0 0
        %1004 = vmatpush1.bf16.msra.mxu0 %v928
        %1005 = vmatprep.subr.bf16.mxu0 0
        %1006 = vmatpush1.bf16.msra.mxu0 %v927
        %1007 = vmatprep.subr.bf16.mxu0 0
        %1008 = vmatpush1.bf16.msra.mxu0 %v926
        %1009 = vmatprep.subr.bf16.mxu0 0
        %1010 = vmatpush1.bf16.msra.mxu0 %v925
        %1011 = vmatprep.subr.bf16.mxu0 0
        %1012 = vmatpush2.bf16.msra.mxu0 0
        %1013 = vmatprep.subr.bf16.mxu0 0
        %1014 = vmatpush2.bf16.msra.mxu0 0
        %1015 = vmatprep.subr.bf16.mxu0 0
        %1016 = vmatpush2.bf16.msra.mxu0 0
        %1017 = vmatprep.subr.bf16.mxu0 0
        %1018 = vmatpush2.bf16.msra.mxu0 0
        %1019 = vmatprep.subr.bf16.mxu0 0
        %1020 = vmatpush2.bf16.msra.mxu0 0
        %1021 = vmatprep.subr.bf16.mxu0 0
        %1022 = vmatpush2.bf16.msra.mxu0 0
        %1023 = vmatprep.subr.bf16.mxu0 0
        %1024 = vmatpush2.bf16.msra.mxu0 0
        %1025 = vmatprep.subr.bf16.mxu0 0
        %1026 = vmatpush2.bf16.msra.mxu0 0
        %1027 = vmatprep.mubr.bf16.mxu0 0
        %1028 = vmatmul.mubr.bf16.gmra.mxu0 %v987
        %v1029 = vpop.f32.mrf.mxu0
        %v1030 = vadd.f32 0.0, %v1029
        %v1031 = vpop.f32.mrf.mxu0
        %v1032 = vpop.f32.mrf.mxu0
        %v1033 = vadd.f32 0.0, %v1032
        %v1034 = vpop.f32.mrf.mxu0
        %1035 = vmatprep.mubr.bf16.mxu0 0
        %1036 = vmatmul.mubr.bf16.gmra.mxu0 %v990
        %v1037 = vpop.f32.mrf.mxu0
        %v1038 = vadd.f32 0.0, %v1037
        %v1039 = vpop.f32.mrf.mxu0
        %v1040 = vpop.f32.mrf.mxu0
        %v1041 = vadd.f32 0.0, %v1040
        %v1042 = vpop.f32.mrf.mxu0
        %1043 = vmatprep.mubr.bf16.mxu0 0
        %1044 = vmatmul.mubr.bf16.gmra.mxu0 %v993
        %v1045 = vpop.f32.mrf.mxu0
        %v1046 = vadd.f32 0.0, %v1045
        %v1047 = vpop.f32.mrf.mxu0
        %v1048 = vpop.f32.mrf.mxu0
        %v1049 = vadd.f32 0.0, %v1048
        %v1050 = vpop.f32.mrf.mxu0
        %1051 = vdwg.mxu0
        %v1052 = vmax.f32 %v1030, 0.0
        %v1053 = vmax.f32 %v1033, 0.0
        %v1054 = vmax.f32 %v1038, 0.0
        %v1055 = vmax.f32 %v1041, 0.0
        %v1056 = vmax.f32 %v1046, 0.0
        %v1057 = vmax.f32 %v1049, 0.0
        %v1058 = vpack.c.bf16 %v1053, %v1052
        %v1059 = vpack.c.bf16 %v1055, %v1054
        %v1060 = vpack.c.bf16 %v1057, %v1056
        %v1064 = vunpack.c.l.b16 %v1058
        %v1065 = vunpack.c.h.b16 %v1058
        %v1066 = vunpack.c.l.b16 %v1059
        %v1067 = vunpack.c.h.b16 %v1059
        %v1068 = vunpack.c.l.b16 %v1060
        %v1069 = vunpack.c.h.b16 %v1060
        %v1070 = vpack.c.b16 %v1064, %v1064
        %v1071 = vpack.c.b16 %v1065, %v1065
        %v1072 = vpack.c.b16 %v1066, %v1066
        %v1073 = vpack.c.b16 %v1067, %v1067
        %v1074 = vpack.c.b16 %v1068, %v1068
        %v1075 = vpack.c.b16 %v1069, %v1069
        %1082 = vst [vmem:[%s282] sm:$0xf] %v1070
        %1083 = vst [vmem:[%s282 + $0x4] sm:$0xf] %v1071
        %1084 = vst [vmem:[%s282 + $0x8] sm:$0xf] %v1072
        %1085 = vst [vmem:[%s282 + $0xc] sm:$0xf] %v1073
        %1086 = vst [vmem:[%s282 + $0x10] sm:$0xf] %v1074
        %1087 = vst [vmem:[%s282 + $0x14] sm:$0xf] %v1075
        %s1088 = sand.u32 %s164, 1
        %s1089 = scalar_lea.sflag [#allocation3], %s1088
        %s1090 = sand.u32 %s164, 1
        %s1091 = smul.addr %s1090, 32
        %s1092 = scalar_lea.vmem [#allocation2], %s1091
        %s1093 = sand.u32 %s190, 1
        %s1094 = scalar_lea.sflag [#allocation5], %s1093
        %s1095 = sand.u32 %s190, 1
        %s1096 = smul.addr %s1095, 24
        %s1097 = scalar_lea.vmem [#allocation4], %s1096
        // Predicated region
        $region45: #{tpu_custom_call.1} parent=43 // pred_check
          %p1098 = pneg %p174
        $region46: #{tpu_custom_call.1} parent=43 // pred_check_branch
          %1100 = sbr.rel (%p1098) target = $region48
        $region47: #{tpu_custom_call.1} parent=43 // pred_region
          %s1102 = ssub.s32 512, 512
          %1103 = vsyncadd %s1089, %s1102
          %s1104 = smul.addr %s25, 8
          %s1105 = smul.addr %s1104, 64
          %s1106 = scalar_lea.hbm %s6, %s1105
          %s1107 = sshll.u32 %s1092, 4
          %s1108 = int_to_ptr.vmem [resolvable:$true] %s1107
          %1113 = dma.vmem_to_hbm [thread:$0]  %s1108, 512, %s1106, %s1089, 64, 64, 4
        $region48: #{tpu_custom_call.1} parent=43 // pred_fallthru
          _
        // Predicated region
        $region49: #{tpu_custom_call.1} parent=43 // pred_check
          %p1114 = pneg %p200
        $region50: #{tpu_custom_call.1} parent=43 // pred_check_branch
          %1116 = sbr.rel (%p1114) target = $region52
        $region51: #{tpu_custom_call.1} parent=43 // pred_region
          %s1118 = ssub.s32 384, 384
          %1119 = vsyncadd %s1094, %s1118
          %s1120 = smul.addr %s25, 6
          %s1121 = smul.addr %s1120, 64
          %s1122 = scalar_lea.hbm %s7, %s1121
          %s1123 = sshll.u32 %s1097, 4
          %s1124 = int_to_ptr.vmem [resolvable:$true] %s1123
          %1129 = dma.vmem_to_hbm [thread:$0]  %s1124, 384, %s1122, %s1094, 64, 64, 4
        $region52: #{tpu_custom_call.1} parent=43 // pred_fallthru
          _
      $region44: #{tpu_custom_call.1} parent=5 // pred_fallthru
        _
      %p1130 = scmp.le.s32.totalorder 2, %s20
      // Predicated region
      $region53: #{tpu_custom_call.1} parent=5 // pred_check
        %p1131 = pneg %p1130
      $region54: #{tpu_custom_call.1} parent=5 // pred_check_branch
        %1133 = sbr.rel (%p1131) target = $region56
      $region55: #{tpu_custom_call.1} parent=5 // pred_region
        %s1134 = ssub.s32 %s20, 2
        // Predicated region
        $region57: #{tpu_custom_call.1} parent=55 // pred_check
          %p1135 = pneg %p180
        $region58: #{tpu_custom_call.1} parent=55 // pred_check_branch
          %1137 = sbr.rel (%p1135) target = $region60
        $region59: #{tpu_custom_call.1} parent=55 // pred_region
          %s1138 = sand.u32 %s165, 1
          %s1139 = scalar_lea.sflag [#allocation3], %s1138
          %s1140 = sand.u32 %s165, 1
          %s1141 = smul.addr %s1140, 32
          %s1142 = scalar_lea.vmem [#allocation2], %s1141
          %1143 = dma.done %s1139, 512
        $region60: #{tpu_custom_call.1} parent=55 // pred_fallthru
          _
        // Predicated region
        $region61: #{tpu_custom_call.1} parent=55 // pred_check
          %p1144 = pneg %p206
        $region62: #{tpu_custom_call.1} parent=55 // pred_check_branch
          %1146 = sbr.rel (%p1144) target = $region64
        $region63: #{tpu_custom_call.1} parent=55 // pred_region
          %s1147 = sand.u32 %s191, 1
          %s1148 = scalar_lea.sflag [#allocation5], %s1147
          %s1149 = sand.u32 %s191, 1
          %s1150 = smul.addr %s1149, 24
          %s1151 = scalar_lea.vmem [#allocation4], %s1150
          %1152 = dma.done %s1148, 384
        $region64: #{tpu_custom_call.1} parent=55 // pred_fallthru
          _
      $region56: #{tpu_custom_call.1} parent=5 // pred_fallthru
        _
    $region6: #{tpu_custom_call.1} parent=1 // loop_footer
      %s24 = sadd.s32 1, %s20
    $region7: #{tpu_custom_call.1} parent=1 // loop_footer_branch
      %19 = sbr.rel target = $region3
    $region8: #{tpu_custom_call.1} parent=1 // loop_exit
      _
    %1153 = vsyncpa [#allocation3], 1
    %s1154 = scalar_lea.sflag [#allocation3], 1
    %1155 = vsyncpa %s1154, 1
    %1156 = vsyncpa [#allocation5], 1
    %s1157 = scalar_lea.sflag [#allocation5], 1
    %1158 = vsyncpa %s1157, 1

</llo_original>
